<compile_context>
chip_gen: v7x
topology: tpu7x:2x2x1
jax: 0.10.0
libtpu: 0.0.40
codegen_flags: <defaults>
</compile_context>

<pallas_src>
import functools
import math

import jax
import jax.numpy as jnp
from jax.experimental import pallas as pl
from jax.experimental.pallas import tpu as pltpu


# ----------------------------------------------------------------------------
# Kernel 1: BH-batched block scores  S[g, i, j] = (Q_i @ K_j^T) / sqrt(d_head)
# ----------------------------------------------------------------------------
def _scores_kernel(q_ref, k_ref, s_ref, *, scale):
    s = jnp.einsum("gqd,gkd->gqk", q_ref[...], k_ref[...],
                   preferred_element_type=jnp.float32)
    s_ref[...] = (s * scale).astype(s_ref.dtype)


# ----------------------------------------------------------------------------
# Kernel 2: low-rank reconstruction + per-block softmax + attn @ V_j, accumulated
# over the innermost ("arbitrary") key-block axis j.  Both factors are stored
# (rank, Lb) so the lane dim is the 128-friendly Lb axis; rank is padded only to
# the sublane pack.
# ----------------------------------------------------------------------------
def _block_attn_kernel(w_ref, vh_ref, vb_ref, out_ref, acc_ref, *,
                       skip_diag, approx_recip):
    i = pl.program_id(1)
    j = pl.program_id(2)

    @pl.when(j == 0)
    def _():
        acc_ref[...] = jnp.zeros_like(acc_ref)

    def _compute():
        # recon[l, k] = sum_r (U*S)^T[r, l] * Vh[r, k]   (f32 MXU accumulation)
        recon = jnp.einsum("grl,grk->glk", w_ref[...], vh_ref[...],
                           preferred_element_type=jnp.float32)      # (G, Lb, Lb)
        m = jnp.max(recon, axis=-1, keepdims=True)
        p = jnp.exp(recon - m)
        inv = pl.reciprocal(jnp.sum(p, axis=-1, keepdims=True), approx=approx_recip)
        attn = p * inv
        acc_ref[...] += jnp.einsum("glk,gkd->gld", attn.astype(vb_ref.dtype),
                                   vb_ref[...], preferred_element_type=jnp.float32)

    if skip_diag:
        pl.when(j != i)(_compute)
    else:
        _compute()

    @pl.when(j == pl.num_programs(2) - 1)
    def _():
        out_ref[...] = acc_ref[...].astype(out_ref.dtype)


# ----------------------------------------------------------------------------
# Kernel 3: diagonal blocks only (one key block per query block, no reduction).
# ----------------------------------------------------------------------------
def _diag_attn_kernel(w_ref, vh_ref, vb_ref, out_ref, *, approx_recip):
    recon = jnp.einsum("grl,grk->glk", w_ref[...], vh_ref[...],
                       preferred_element_type=jnp.float32)
    m = jnp.max(recon, axis=-1, keepdims=True)
    p = jnp.exp(recon - m)
    inv = pl.reciprocal(jnp.sum(p, axis=-1, keepdims=True), approx=approx_recip)
    attn = p * inv
    out = jnp.einsum("glk,gkd->gld", attn.astype(vb_ref.dtype), vb_ref[...],
                     preferred_element_type=jnp.float32)
    out_ref[...] = out.astype(out_ref.dtype)


# ----------------------------------------------------------------------------
# Helpers
# ----------------------------------------------------------------------------
def _vmem_limit_bytes():
    # scoped-VMEM target per chip generation: ~48 MiB on v7x (64 MiB physical),
    # ~96-100 MiB on v5e/v6e (128 MiB physical).
    try:
        cap = pltpu.get_tpu_info().vmem_capacity_bytes
        return int(min(cap * 3 // 4, 100 * 1024 * 1024))
    except Exception:
        return 48 * 1024 * 1024


def _choose_group(bh, g_budget):
    """Pick a BH tile size <= g_budget, preferring exact divisors; otherwise pick
    the size in [g_budget//2, g_budget] that minimizes zero padding of the BH
    axis (avoids the silent G=1 perf cliff for awkward batch*heads)."""
    g_budget = max(1, min(bh, int(g_budget)))
    best_g = g_budget
    best_pad = -(-bh // best_g) * best_g - bh
    for g in range(g_budget, max(1, g_budget // 2) - 1, -1):
        pad = -(-bh // g) * g - bh
        if pad < best_pad:
            best_g, best_pad = g, pad
        if best_pad == 0:
            break
    return best_g, bh + best_pad


def _lowrank_factors(blocks, rank, *, oversample, n_iter, pad_to, factor_dtype,
                     compute_dtype, key, force_exact):
    """Rank-`rank` truncated SVD factors of (..., Lb, Lb) score blocks.

    Returns (W, Vh) where W = (U_r * S_r)^T and Vh = Vh_r, both of shape
    (..., rank_padded, Lb) so the lane dim is Lb and only the sublane (rank) dim
    is zero-padded to `pad_to`.
    """
    lb = blocks.shape[-1]
    rank = int(rank)
    if force_exact or rank + oversample >= lb:
        # Exact truncated SVD (also used when the randomized sketch would cover
        # the whole column space anyway -- identical result, no savings).
        u, s, vh = jnp.linalg.svd(blocks.astype(jnp.float32), full_matrices=False)
        u_r, s_r, vh_r = u[..., :, :rank], s[..., :rank], vh[..., :rank, :]
    else:
        # Randomized subspace SVD (Halko et al.): sketch matmuls on the MXU,
        # QR / SVD only on the small (Lb x sketch) / (sketch x Lb) matrices.
        sketch = rank + oversample
        sc = blocks.astype(compute_dtype)
        omega = jax.random.normal(key, (lb, sketch),
                                  dtype=jnp.float32).astype(compute_dtype)
        y = jnp.einsum("...lk,kr->...lr", sc, omega,
                       preferred_element_type=jnp.float32)
        for _ in range(n_iter):
            qm, _ = jnp.linalg.qr(y)
            z = jnp.einsum("...lk,...lr->...kr", sc, qm.astype(compute_dtype),
                           preferred_element_type=jnp.float32)
            qz, _ = jnp.linalg.qr(z)
            y = jnp.einsum("...lk,...kr->...lr", sc, qz.astype(compute_dtype),
                           preferred_element_type=jnp.float32)
        qf, _ = jnp.linalg.qr(y)                                   # (..., Lb, sketch)
        b = jnp.einsum("...lr,...lk->...rk", qf.astype(compute_dtype), sc,
                       preferred_element_type=jnp.float32)         # (..., sketch, Lb)
        ub, s, vh = jnp.linalg.svd(b, full_matrices=False)
        u = jnp.einsum("...ls,...sr->...lr", qf, ub)               # (..., Lb, sketch)
        u_r, s_r, vh_r = u[..., :, :rank], s[..., :rank], vh[..., :rank, :]

    # fold singular values into U and transpose so Lb is the lane dim.
    w_t = jnp.swapaxes(u_r * s_r[..., None, :], -1, -2)            # (..., rank, Lb)
    rp = max(pad_to, -(-rank // pad_to) * pad_to)
    if rp > rank:
        pad = [(0, 0)] * (w_t.ndim - 2) + [(0, rp - rank), (0, 0)]
        w_t = jnp.pad(w_t, pad)
        vh_r = jnp.pad(vh_r, pad)
    return w_t.astype(factor_dtype), vh_r.astype(factor_dtype)


# ----------------------------------------------------------------------------
# Wrapper
# ----------------------------------------------------------------------------
def blockwise_low_rank_attention(query, key, value, *, n_heads, block_size,
                                 adaptive_ranks=True, max_rank=256,
                                 factor_dtype=jnp.bfloat16, bh_tile=None,
                                 rsvd_oversample=8, rsvd_iters=1,
                                 exact_svd=False, rng_seed=0):
    B, L, D = query.shape
    H = n_heads
    assert D % H == 0, "d_model must be divisible by n_heads"
    dh = D // H
    Lb = int(block_size)
    assert L % Lb == 0, "seq_len must be divisible by block_size in this kernel"
    nb = L // Lb
    assert Lb % 8 == 0 or nb == 1, "block_size must be a multiple of 8"
    BH = B * H
    scale = 1.0 / math.sqrt(dh)
    out_dtype = query.dtype

    f32 = jnp.dtype(jnp.float32)
    compute_dtype = jnp.float32 if jnp.dtype(factor_dtype) == f32 else jnp.bfloat16
    cb = jnp.dtype(compute_dtype).itemsize
    ob = jnp.dtype(out_dtype).itemsize
    pad_to = 8 if cb == 4 else 16
    approx_recip = jnp.dtype(compute_dtype) != f32

    # ---- static rank schedule (mirrors the PyTorch module) -------------------
    def rank_of(ratio):
        return min(max(1, int(Lb * ratio)), max_rank, Lb)

    if adaptive_ranks:
        r_diag, r_off = rank_of(0.3), rank_of(0.1)
    else:
        r_diag = r_off = rank_of(0.2)
    split = (nb > 1) and (r_diag != r_off)      # separate diag / off-diag passes
    rp_diag = max(pad_to, -(-r_diag // pad_to) * pad_to)
    rp_off = max(pad_to, -(-r_off // pad_to) * pad_to)

    # ---- head split (single relayout) + compute dtype (bf16 by default) ------
    def split_heads(x):
        return x.reshape(B, L, H, dh).transpose(0, 2, 1, 3).reshape(BH, L, dh)

    qh = split_heads(query).astype(compute_dtype)
    kh = split_heads(key).astype(compute_dtype)
    v_heads = split_heads(value).astype(compute_dtype)

    # ---- chip-aware VMEM budget -> BH tile size G (padding instead of G=1) ---
    vmem_limit = _vmem_limit_bytes()
    budget = int(vmem_limit * 0.6)

    def per_slice_attn(rp):
        # one bh slice of a kernel-2/3 grid step: double-buffered factor / V / out
        # tiles, f32 accumulator, plus the (Lb, Lb) f32 recon / exp / attn temps.
        return (2 * 2 * rp * Lb * cb + 2 * Lb * dh * cb + 2 * Lb * dh * ob
                + Lb * dh * 4 + 3 * Lb * Lb * 4)

    per_scores = 2 * 2 * Lb * dh * cb + 2 * Lb * Lb * cb
    worst = max(per_scores, per_slice_attn(rp_off), per_slice_attn(rp_diag))
    g_budget = max(1, budget // max(worst, 1))

    if bh_tile is not None:
        G = int(bh_tile)
        BHp = -(-BH // G) * G
    else:
        G, BHp = _choose_group(BH, g_budget)
    # keep >= 2 parallel grid chunks when possible (dual-TensorCore parts).
    if BHp // G == 1 and nb == 1 and BH > 1 and BH % 2 == 0:
        G, BHp = BH // 2, BH

    if BHp > BH:
        pad = ((0, BHp - BH), (0, 0), (0, 0))
        qh = jnp.pad(qh, pad)
        kh = jnp.pad(kh, pad)
        v_heads = jnp.pad(v_heads, pad)

    # ---- kernel 1: all (bh-tile, query-block, key-block) score tiles ----------
    scores = pl.pallas_call(
        functools.partial(_scores_kernel, scale=scale),
        out_shape=jax.ShapeDtypeStruct((BHp, nb, nb, Lb, Lb), compute_dtype),
        grid=(BHp // G, nb, nb),
        in_specs=[
            pl.BlockSpec((G, Lb, dh), lambda g, i, j: (g, i, 0)),   # Q (j-invariant)
            pl.BlockSpec((G, Lb, dh), lambda g, i, j: (g, j, 0)),   # K
        ],
        out_specs=pl.BlockSpec((G, None, None, Lb, Lb),
                               lambda g, i, j: (g, i, j, 0, 0)),
        compiler_params=pltpu.CompilerParams(
            dimension_semantics=("parallel", "parallel", "arbitrary"),
            vmem_limit_bytes=vmem_limit),
    )(qh, kh)

    # ---- low-rank factors (randomized subspace SVD; exact when sketch >= Lb) --
    # TODO(synk): the QR + small SVD of the sketch have no Pallas/Mosaic primitive
    # and stay in XLA; the heavy O(Lb^2 * r) sketch matmuls run on the MXU.
    k_off, k_diag = jax.random.split(jax.random.PRNGKey(rng_seed))
    rsvd = functools.partial(_lowrank_factors, oversample=rsvd_oversample,
                             n_iter=rsvd_iters, pad_to=pad_to,
                             factor_dtype=factor_dtype, compute_dtype=compute_dtype,
                             force_exact=exact_svd)

    cp_red = pltpu.CompilerParams(
        dimension_semantics=("parallel", "parallel", "arbitrary"),
        vmem_limit_bytes=vmem_limit)

    def block_pass(w, vhf, skip_diag):
        rp = w.shape[-2]
        return pl.pallas_call(
            functools.partial(_block_attn_kernel, skip_diag=skip_diag,
                              approx_recip=approx_recip),
            out_shape=jax.ShapeDtypeStruct((BHp, L, dh), out_dtype),
            grid=(BHp // G, nb, nb),                    # key-block (reduction) last
            in_specs=[
                pl.BlockSpec((G, None, None, rp, Lb),
                             lambda g, i, j: (g, i, j, 0, 0)),         # (U*S)^T
                pl.BlockSpec((G, None, None, rp, Lb),
                             lambda g, i, j: (g, i, j, 0, 0)),         # Vh
                pl.BlockSpec((G, Lb, dh), lambda g, i, j: (g, j, 0)),  # V block j
            ],
            out_specs=pl.BlockSpec((G, Lb, dh), lambda g, i, j: (g, i, 0)),
            scratch_shapes=[pltpu.VMEM((G, Lb, dh), jnp.float32)],
            compiler_params=cp_red,
        )(w, vhf, v_heads)

    if split:
        # off-diagonal blocks at rank r_off (diagonal tiles skipped in-kernel).
        w_off, vh_off = rsvd(scores, r_off, key=k_off)
        out_off = block_pass(w_off, vh_off, skip_diag=True)

        # diagonal blocks at rank r_diag (only 1/nb of the blocks; no reduction).
        diag_idx = jnp.arange(nb)
        w_diag, vh_diag = rsvd(scores[:, diag_idx, diag_idx], r_diag, key=k_diag)
        rpd = w_diag.shape[-2]
        out_diag = pl.pallas_call(
            functools.partial(_diag_attn_kernel, approx_recip=approx_recip),
            out_shape=jax.ShapeDtypeStruct((BHp, L, dh), out_dtype),
            grid=(BHp // G, nb),
            in_specs=[
                pl.BlockSpec((G, None, rpd, Lb), lambda g, i: (g, i, 0, 0)),
                pl.BlockSpec((G, None, rpd, Lb), lambda g, i: (g, i, 0, 0)),
                pl.BlockSpec((G, Lb, dh), lambda g, i: (g, i, 0)),
            ],
            out_specs=pl.BlockSpec((G, Lb, dh), lambda g, i: (g, i, 0)),
            compiler_params=pltpu.CompilerParams(
                dimension_semantics=("parallel", "parallel"),
                vmem_limit_bytes=vmem_limit),
        )(w_diag, vh_diag, v_heads)

        out_bh = (out_off.astype(jnp.float32)
                  + out_diag.astype(jnp.float32)).astype(out_dtype)
    else:
        # uniform rank (non-adaptive, a single block, or equal diag/off ranks).
        w_uni, vh_uni = rsvd(scores, r_diag, key=k_off)
        out_bh = block_pass(w_uni, vh_uni, skip_diag=False)

    # [B*H(+pad), L, dh] -> [B, L, D]
    out = out_bh[:BH].reshape(B, H, L, dh).transpose(0, 2, 1, 3).reshape(B, L, D)
    return out.astype(query.dtype)


# ----------------------------------------------------------------------------
# Pure-JAX reference (mirrors the PyTorch module) for a sanity check.
# ----------------------------------------------------------------------------
def reference_blockwise(query, key, value, *, n_heads, block_size,
                        adaptive_ranks=True, max_rank=256):
    B, L, D = query.shape
    H = n_heads
    dh = D // H
    out = jnp.zeros_like(query)
    for i in range(0, L, block_size):
        for j in range(0, L, block_size):
            qb = query[:, i:i + block_size]
            kb = key[:, j:j + block_size]
            vb = value[:, j:j + block_size]
            if adaptive_ranks:
                ratio = 0.3 if i == j else 0.1
            else:
                ratio = 0.2
            Lb = qb.shape[1]
            rank = max(1, int(Lb * ratio))
            rank = min(rank, max_rank, Lb)
            Q = qb.reshape(B, Lb, H, dh).transpose(0, 2, 1, 3)
            K = kb.reshape(B, Lb, H, dh).transpose(0, 2, 1, 3)
            V = vb.reshape(B, Lb, H, dh).transpose(0, 2, 1, 3)
            s = jnp.einsum('bhqd,bhkd->bhqk', Q, K) / math.sqrt(dh)
            U, S, Vh = jnp.linalg.svd(s, full_matrices=False)
            Sm = S.at[..., rank:].set(0.0)
            s_lr = jnp.einsum('bhqr,bhr,bhrk->bhqk', U, Sm, Vh)
            attn = jax.nn.softmax(s_lr, axis=-1)
            o = jnp.einsum('bhqk,bhkd->bhqd', attn, V)
            o = o.transpose(0, 2, 1, 3).reshape(B, Lb, D)
            out = out.at[:, i:i + block_size].add(o)
    return out


if __name__ == "__main__":
    # small shapes consistent with the module's forward
    batch, seq_len, d_model, n_heads, block_size = 2, 16, 32, 4, 8

    key0 = jax.random.PRNGKey(0)
    kq, kk, kv = jax.random.split(key0, 3)
    q = jax.random.normal(kq, (batch, seq_len, d_model), dtype=jnp.float32)
    k = jax.random.normal(kk, (batch, seq_len, d_model), dtype=jnp.float32)
    v = jax.random.normal(kv, (batch, seq_len, d_model), dtype=jnp.float32)

    ref = jax.block_until_ready(
        reference_blockwise(q, k, v, n_heads=n_heads, block_size=block_size,
                            adaptive_ranks=True))

    # exact-math check: f32 scores/factors + exact reciprocal -> tight tolerance.
    out_f32 = jax.block_until_ready(
        blockwise_low_rank_attention(q, k, v, n_heads=n_heads,
                                     block_size=block_size,
                                     adaptive_ranks=True,
                                     factor_dtype=jnp.float32))
    assert out_f32.shape == (batch, seq_len, d_model)
    assert bool(jnp.all(jnp.isfinite(out_f32)))
    err_f32 = float(jnp.max(jnp.abs(out_f32 - ref)))
    assert err_f32 < 3e-2, f"f32 mismatch vs reference: max_err={err_f32}"

    # uniform-rank (non-adaptive) path exercises the single-pass kernel variant.
    ref_u = jax.block_until_ready(
        reference_blockwise(q, k, v, n_heads=n_heads, block_size=block_size,
                            adaptive_ranks=False))
    out_u = jax.block_until_ready(
        blockwise_low_rank_attention(q, k, v, n_heads=n_heads,
                                     block_size=block_size,
                                     adaptive_ranks=False,
                                     factor_dtype=jnp.float32))
    err_u = float(jnp.max(jnp.abs(out_u - ref_u)))
    assert err_u < 3e-2, f"uniform-rank mismatch vs reference: max_err={err_u}"

    # default perf path: bf16 scores + factors with f32 MXU accumulation.  bf16
    # rounding of the scores can rotate nearly-degenerate truncated SVD subspaces,
    # so this check is deliberately loose (max + mean).
    out_bf16 = jax.block_until_ready(
        blockwise_low_rank_attention(q, k, v, n_heads=n_heads,
                                     block_size=block_size,
                                     adaptive_ranks=True))
    assert out_bf16.shape == (batch, seq_len, d_model)
    assert bool(jnp.all(jnp.isfinite(out_bf16)))
    diff = jnp.abs(out_bf16.astype(jnp.float32) - ref)
    err_max = float(jnp.max(diff))
    err_mean = float(jnp.mean(diff))
    assert err_max < 1.0 and err_mean < 0.15, (
        f"bf16 mismatch vs reference: max={err_max}, mean={err_mean}")

    print("KERNEL_OK")
</pallas_src>

<mosaic_0001>
module attributes {stable_mosaic.version = 11 : i64} {
  func.func @_scores_kernel(%arg0: i32, %arg1: i32, %arg2: i32, %arg3: memref<8x8x8xf32, #tpu.memory_space<vmem>>, %arg4: memref<8x8x8xf32, #tpu.memory_space<vmem>>, %arg5: memref<8x1x1x8x8xf32, #tpu.memory_space<vmem>>) attributes {dimension_semantics = [#tpu.dimension_semantics<parallel>, #tpu.dimension_semantics<parallel>, #tpu.dimension_semantics<arbitrary>], iteration_bounds = array<i64: 1, 2, 2>, scalar_prefetch = 0 : i64, scratch_operands = 0 : i64, tpu.core_type = #tpu.core_type<tc>, window_params = [{transform_indices = @transform_0, window_bounds = array<i64: 8, 8, 8>}, {transform_indices = @transform_1, window_bounds = array<i64: 8, 8, 8>}, {transform_indices = @transform_2, window_bounds = array<i64: 8, 1, 1, 8, 8>}]} {
    %c0 = arith.constant 0 : index
    %c0_0 = arith.constant 0 : index
    %c0_1 = arith.constant 0 : index
    %0 = vector.load %arg3[%c0, %c0_0, %c0_1] : memref<8x8x8xf32, #tpu.memory_space<vmem>>, vector<8x8x8xf32>
    %c0_2 = arith.constant 0 : index
    %c0_3 = arith.constant 0 : index
    %c0_4 = arith.constant 0 : index
    %1 = vector.load %arg4[%c0_2, %c0_3, %c0_4] : memref<8x8x8xf32, #tpu.memory_space<vmem>>, vector<8x8x8xf32>
    "tpu.trace_start"() <{level = 10 : i32, message = "gqd,gkd->gqk"}> : () -> ()
    %cst = arith.constant dense<0.000000e+00> : vector<8x8x8xf32>
    %2 = tpu.matmul %0, %1, %cst {dimension_numbers = #tpu.dot_dimension_numbers<[2], [2], [1], [1], [0, 0, 0, 1, 1, 1], [0], [0]>} : vector<8x8x8xf32>, vector<8x8x8xf32>, vector<8x8x8xf32> -> vector<8x8x8xf32>
    "tpu.trace_stop"() : () -> ()
    %cst_5 = arith.constant 0.353553385 : f32
    %3 = vector.broadcast %cst_5 : f32 to vector<8x8x8xf32>
    %4 = arith.mulf %2, %3 : vector<8x8x8xf32>
    %c0_6 = arith.constant 0 : index
    %c0_7 = arith.constant 0 : index
    %c0_8 = arith.constant 0 : index
    %c0_9 = arith.constant 0 : index
    %c0_10 = arith.constant 0 : index
    %5 = vector.load %arg5[%c0_6, %c0_7, %c0_8, %c0_9, %c0_10] : memref<8x1x1x8x8xf32, #tpu.memory_space<vmem>>, vector<8x1x1x8x8xf32>
    %6 = vector.shape_cast %5 : vector<8x1x1x8x8xf32> to vector<8x8x8xf32>
    %7 = vector.shape_cast %4 : vector<8x8x8xf32> to vector<8x1x1x8x8xf32>
    tpu.vector_store %arg5[%c0_6, %c0_7, %c0_8, %c0_9, %c0_10], %7 {strides = array<i32>} : memref<8x1x1x8x8xf32, #tpu.memory_space<vmem>>, vector<8x1x1x8x8xf32>,
    return
  }
  func.func @transform_0(%arg0: i32, %arg1: i32, %arg2: i32) -> (i32, i32, i32) {
    %c0_i32 = arith.constant 0 : i32
    %c0_i32_0 = arith.constant 0 : i32
    return %arg0, %arg1, %c0_i32 : i32, i32, i32
  }
  func.func @transform_1(%arg0: i32, %arg1: i32, %arg2: i32) -> (i32, i32, i32) {
    %c0_i32 = arith.constant 0 : i32
    %c0_i32_0 = arith.constant 0 : i32
    return %arg0, %arg2, %c0_i32 : i32, i32, i32
  }
  func.func @transform_2(%arg0: i32, %arg1: i32, %arg2: i32) -> (i32, i32, i32, i32, i32) {
    %c0_i32 = arith.constant 0 : i32
    %c0_i32_0 = arith.constant 0 : i32
    %c0_i32_1 = arith.constant 0 : i32
    return %arg0, %arg1, %arg2, %c0_i32, %c0_i32_0 : i32, i32, i32, i32, i32
  }
}

</mosaic_0001>

<llo_original>
// kernel: tpu_custom_call.1
$region0: #{tpu_custom_call.1}
  #allocation0 [shape = 'u32[]', space=smem, size = 0x4, offset = 0x4, fixed_abs, tag = 'smem constant byte address 0x4 - core index']
  #allocation1 [shape = 'u32[144,128]{1,0:T(1,128)}', space=vmem, size = 0x12000, scoped, tag = 'internal scratch']
  %s0 = inlined_call_operand.vmem [shape: f32[8,16,8], index: 0, kind: input, shape index: {}]
  %s1 = inlined_call_operand.vmem [shape: f32[8,16,8], index: 1, kind: input, shape index: {}]
  %s2 = inlined_call_operand.hbm [shape: f32[8,2,2,8,8], index: 2, kind: output, shape index: {}]
  %s3 = sld [smem:[#allocation0]]
  $region117: #{tpu_custom_call.1} parent=0
    _
  %s5 = ssub.s32 1, %s3
  %s6 = scalar_select 0, %s5, %s3
  $region1: #{tpu_custom_call.1} parent=0
    #allocation2 [shape = 'u8[65536]{0}', space=vmem, size = 0x10000, scoped, tag = 'input window, operand 0']
    #allocation3 [shape = 'u8[65536]{0}', space=vmem, size = 0x10000, scoped, tag = 'input window, operand 1']
    #allocation4 [shape = 'u8[65536]{0}', space=vmem, size = 0x10000, scoped, tag = 'output window, operand 0']
    #allocation5 [shape = 's32[2]{0}', space=sflag, size = 0x8, scoped, tag = 'scoped memory for tpu_custom_call.1']
    %7 = vsyncpa [#allocation5], 0
    %s8 = scalar_lea.sflag [#allocation5], 1
    %9 = vsyncpa %s8, 0
    loop: start=0, step=1, limit=6
    $region2: #{tpu_custom_call.1} parent=1 // loop_pre_header
      _
    $region3: #{tpu_custom_call.1} parent=1 // loop_header
      %s11 = sphi 0, %s15
      %p12 = scmp.ge.s32.totalorder %s11, 6
      %s18 = sphi 0, %s37
      %s19 = sphi 0, %s33
      %s20 = sphi 0, %s29
      %s21 = sphi 0, %s18
      %s22 = sphi 0, %s19
      %s23 = sphi 0, %s20
      %s24 = sphi 0, %s21
      %s25 = sphi 0, %s22
      %s26 = sphi 0, %s23
      %s42 = sphi 0, %s44
      %s45 = sphi 0, %s42
      %s46 = sphi 0, %s45
      %s62 = sphi 0, %s46
      %s70 = sphi 0, %s72
      %s73 = sphi 0, %s70
      %s74 = sphi 0, %s73
      %s90 = sphi 0, %s74
      %s100 = sphi 0, %s102
      %s103 = sphi 0, %s100
      %s104 = sphi 0, %s103
      %s120 = sphi 0, %s104
    $region4: #{tpu_custom_call.1} parent=1 // loop_header_branch
      %14 = sbr.rel (%p12) target = $region8
    $region5: #{tpu_custom_call.1} parent=1 // loop_body
      %s16 = ssub.s32 %s11, 1
      %s17 = ssub.s32 %s11, 2
      %s27 = sadd.s32 1, %s20
      %p28 = scmp.ge.s32.totalorder %s27, 2
      %s29 = scalar_select %p28, 0, %s27
      %s30 = sadd.s32 1, %s19
      %s31 = scalar_select %p28, %s30, %s19
      %p32 = scmp.ge.s32.totalorder %s31, 2
      %s33 = scalar_select %p32, 0, %s31
      %s34 = sadd.s32 1, %s18
      %s35 = scalar_select %p32, %s34, %s18
      %p36 = scmp.ge.s32.totalorder %s35, 1
      %s37 = scalar_select %p36, 0, %s35
      %s38 = ssub.s32 %s18, %s37
      %s39 = ssub.s32 %s19, %s33
      %s40 = sor.u32 %s38, %s39
      %p41 = scmp.eq.s32.totalorder %s40, 0
      %s43 = sadd.s32 %s42, 1
      %s44 = scalar_select %p41, %s42, %s43
      %p47 = pneg %p41
      %p48 = scmp.eq.s32.totalorder %s11, 3
      %p49 = por %p47, %p48
      %p50 = scmp.ne.s32.totalorder %s42, %s45
      %p51 = scmp.eq.s32.totalorder %s11, 0
      %p52 = por %p50, %p51
      %p53 = scmp.ne.s32.totalorder %s42, %s45
      %p54 = scmp.eq.s32.totalorder %s16, 3
      %p55 = por %p53, %p54
      %p56 = scmp.ne.s32.totalorder %s45, %s46
      %p57 = scmp.eq.s32.totalorder %s16, 0
      %p58 = por %p56, %p57
      %p59 = scmp.ne.s32.totalorder %s45, %s46
      %p60 = scmp.eq.s32.totalorder %s17, 3
      %p61 = por %p59, %p60
      %p63 = scmp.ne.s32.totalorder %s46, %s62
      %p64 = scmp.eq.s32.totalorder %s17, 0
      %p65 = por %p63, %p64
      %s66 = ssub.s32 %s18, %s37
      %s67 = ssub.s32 %s20, %s29
      %s68 = sor.u32 %s66, %s67
      %p69 = scmp.eq.s32.totalorder %s68, 0
      %s71 = sadd.s32 %s70, 1
      %s72 = scalar_select %p69, %s70, %s71
      %p75 = pneg %p69
      %p76 = scmp.eq.s32.totalorder %s11, 3
      %p77 = por %p75, %p76
      %p78 = scmp.ne.s32.totalorder %s70, %s73
      %p79 = scmp.eq.s32.totalorder %s11, 0
      %p80 = por %p78, %p79
      %p81 = scmp.ne.s32.totalorder %s70, %s73
      %p82 = scmp.eq.s32.totalorder %s16, 3
      %p83 = por %p81, %p82
      %p84 = scmp.ne.s32.totalorder %s73, %s74
      %p85 = scmp.eq.s32.totalorder %s16, 0
      %p86 = por %p84, %p85
      %p87 = scmp.ne.s32.totalorder %s73, %s74
      %p88 = scmp.eq.s32.totalorder %s17, 3
      %p89 = por %p87, %p88
      %p91 = scmp.ne.s32.totalorder %s74, %s90
      %p92 = scmp.eq.s32.totalorder %s17, 0
      %p93 = por %p91, %p92
      %s94 = ssub.s32 %s18, %s37
      %s95 = ssub.s32 %s19, %s33
      %s96 = sor.u32 %s94, %s95
      %s97 = ssub.s32 %s20, %s29
      %s98 = sor.u32 %s96, %s97
      %p99 = scmp.eq.s32.totalorder %s98, 0
      %s101 = sadd.s32 %s100, 1
      %s102 = scalar_select %p99, %s100, %s101
      %p105 = pneg %p99
      %p106 = scmp.eq.s32.totalorder %s11, 3
      %p107 = por %p105, %p106
      %p108 = scmp.ne.s32.totalorder %s100, %s103
      %p109 = scmp.eq.s32.totalorder %s11, 0
      %p110 = por %p108, %p109
      %p111 = scmp.ne.s32.totalorder %s100, %s103
      %p112 = scmp.eq.s32.totalorder %s16, 3
      %p113 = por %p111, %p112
      %p114 = scmp.ne.s32.totalorder %s103, %s104
      %p115 = scmp.eq.s32.totalorder %s16, 0
      %p116 = por %p114, %p115
      %p117 = scmp.ne.s32.totalorder %s103, %s104
      %p118 = scmp.eq.s32.totalorder %s17, 3
      %p119 = por %p117, %p118
      %p121 = scmp.ne.s32.totalorder %s104, %s120
      %p122 = scmp.eq.s32.totalorder %s17, 0
      %p123 = por %p121, %p122
      %p124 = scmp.le.s32.totalorder 1, %s11
      %p125 = scmp.lt.s32.totalorder %s11, 5
      %p126 = pnand %p124, %p125
      %p127 = pneg %p126
      // Predicated region
      $region9: #{tpu_custom_call.1} parent=5 // pred_check
        _
      $region10: #{tpu_custom_call.1} parent=5 // pred_check_branch
        %129 = sbr.rel (%p126) target = $region12
      $region11: #{tpu_custom_call.1} parent=5 // pred_region
        %s130 = ssub.s32 %s11, 1
      $region12: #{tpu_custom_call.1} parent=5 // pred_fallthru
        _
      %p131 = scmp.lt.s32.totalorder %s11, 4
      // Predicated region
      $region13: #{tpu_custom_call.1} parent=5 // pred_check
        %p132 = pneg %p131
      $region14: #{tpu_custom_call.1} parent=5 // pred_check_branch
        %134 = sbr.rel (%p132) target = $region16
      $region15: #{tpu_custom_call.1} parent=5 // pred_region
        // Predicated region
        $region17: #{tpu_custom_call.1} parent=15 // pred_check
          %p135 = pneg %p52
        $region18: #{tpu_custom_call.1} parent=15 // pred_check_branch
          %137 = sbr.rel (%p135) target = $region20
        $region19: #{tpu_custom_call.1} parent=15 // pred_region
          %s138 = sand.u32 %s42, 1
          %s139 = sand.u32 %s42, 1
          %s140 = smul.addr %s139, 64
          %s141 = scalar_lea.vmem [#allocation2], %s140
          %s142 = smul.u32 8, %s18
          %s143 = smul.addr %s142, 2
          %s144 = sadd.s32 %s19, %s143
          %s145 = smul.addr %s144, 8
          %s146 = scalar_lea.vmem %s0, %s145
          // Predicated region
          $region21: #{tpu_custom_call.1} parent=19 // pred_check
            _
          $region22: #{tpu_custom_call.1} parent=19 // pred_check_branch
            %148 = sbr.rel (0) target = $region24
          $region23: #{tpu_custom_call.1} parent=19 // pred_region
            // Predicated region
            $region25: #{tpu_custom_call.1} parent=23 // pred_check
              _
            $region26: #{tpu_custom_call.1} parent=23 // pred_check_branch
              %150 = sbr.rel (0) target = $region28
            $region27: #{tpu_custom_call.1} parent=23 // pred_region
              // Predicated region
              $region40: #{tpu_custom_call.1} parent=27 // pred_check
                _
              $region41: #{tpu_custom_call.1} parent=27 // pred_check_branch
                %179 = sbr.rel (0) target = $region43
              $region42: #{tpu_custom_call.1} parent=27 // pred_region
                loop: start=0, step=1, limit=1
                $region44: #{tpu_custom_call.1} parent=42 // loop_pre_header
                  _
                $region45: #{tpu_custom_call.1} parent=42 // loop_header
                  %s181 = sphi 0, %s185
                  %p182 = scmp.ge.s32.totalorder %s181, 1
                  %s186 = sphi %s146, %s146
                  %s187 = sphi %s141, %s141
                $region46: #{tpu_custom_call.1} parent=42 // loop_header_branch
                  %184 = sbr.rel (%p182) target = $region50
                $region47: #{tpu_custom_call.1} parent=42 // loop_body
                  %v188 = vld [vmem:[%s186] sm:$0xff]
                  %189 = vst [vmem:[%s187] sm:$0xff] %v188
                  %v190 = vld [vmem:[%s186 + $0x10] sm:$0xff]
                  %191 = vst [vmem:[%s187 + $0x8] sm:$0xff] %v190
                  %v192 = vld [vmem:[%s186 + $0x20] sm:$0xff]
                  %193 = vst [vmem:[%s187 + $0x10] sm:$0xff] %v192
                  %v194 = vld [vmem:[%s186 + $0x30] sm:$0xff]
                  %195 = vst [vmem:[%s187 + $0x18] sm:$0xff] %v194
                  %v196 = vld [vmem:[%s186 + $0x40] sm:$0xff]
                  %197 = vst [vmem:[%s187 + $0x20] sm:$0xff] %v196
                  %v198 = vld [vmem:[%s186 + $0x50] sm:$0xff]
                  %199 = vst [vmem:[%s187 + $0x28] sm:$0xff] %v198
                  %v200 = vld [vmem:[%s186 + $0x60] sm:$0xff]
                  %201 = vst [vmem:[%s187 + $0x30] sm:$0xff] %v200
                  %v202 = vld [vmem:[%s186 + $0x70] sm:$0xff]
                  %203 = vst [vmem:[%s187 + $0x38] sm:$0xff] %v202
                $region48: #{tpu_custom_call.1} parent=42 // loop_footer
                  %s185 = sadd.s32 1, %s181
                $region49: #{tpu_custom_call.1} parent=42 // loop_footer_branch
                  %180 = sbr.rel target = $region45
                $region50: #{tpu_custom_call.1} parent=42 // loop_exit
                  _
              $region43: #{tpu_custom_call.1} parent=27 // pred_fallthru
                _
              // Predicated region
              $region51: #{tpu_custom_call.1} parent=27 // pred_check
                _
              $region52: #{tpu_custom_call.1} parent=27 // pred_check_branch
                %205 = sbr.rel target = $region54
              $region53: #{tpu_custom_call.1} parent=27 // pred_region
                _
              $region54: #{tpu_custom_call.1} parent=27 // pred_fallthru
                _
            $region28: #{tpu_custom_call.1} parent=23 // pred_fallthru
              _
            // Predicated region
            $region29: #{tpu_custom_call.1} parent=23 // pred_check
              _
            $region30: #{tpu_custom_call.1} parent=23 // pred_check_branch
              %152 = sbr.rel target = $region32
            $region31: #{tpu_custom_call.1} parent=23 // pred_region
              loop: start=0, step=1, limit=1
              $region33: #{tpu_custom_call.1} parent=31 // loop_pre_header
                _
              $region34: #{tpu_custom_call.1} parent=31 // loop_header
                %s155 = sphi 0, %s159
                %p156 = scmp.ge.s32.totalorder %s155, 1
                %s160 = sphi %s146, %s146
                %s161 = sphi %s141, %s141
              $region35: #{tpu_custom_call.1} parent=31 // loop_header_branch
                %158 = sbr.rel (%p156) target = $region39
              $region36: #{tpu_custom_call.1} parent=31 // loop_body
                %v162 = vld [vmem:[%s160] sm:$0xff]
                %163 = vst [vmem:[%s161] sm:$0xff] %v162
                %v164 = vld [vmem:[%s160 + $0x10] sm:$0xff]
                %165 = vst [vmem:[%s161 + $0x8] sm:$0xff] %v164
                %v166 = vld [vmem:[%s160 + $0x20] sm:$0xff]
                %167 = vst [vmem:[%s161 + $0x10] sm:$0xff] %v166
                %v168 = vld [vmem:[%s160 + $0x30] sm:$0xff]
                %169 = vst [vmem:[%s161 + $0x18] sm:$0xff] %v168
                %v170 = vld [vmem:[%s160 + $0x40] sm:$0xff]
                %171 = vst [vmem:[%s161 + $0x20] sm:$0xff] %v170
                %v172 = vld [vmem:[%s160 + $0x50] sm:$0xff]
                %173 = vst [vmem:[%s161 + $0x28] sm:$0xff] %v172
                %v174 = vld [vmem:[%s160 + $0x60] sm:$0xff]
                %175 = vst [vmem:[%s161 + $0x30] sm:$0xff] %v174
                %v176 = vld [vmem:[%s160 + $0x70] sm:$0xff]
                %177 = vst [vmem:[%s161 + $0x38] sm:$0xff] %v176
              $region37: #{tpu_custom_call.1} parent=31 // loop_footer
                %s159 = sadd.s32 1, %s155
              $region38: #{tpu_custom_call.1} parent=31 // loop_footer_branch
                %154 = sbr.rel target = $region34
              $region39: #{tpu_custom_call.1} parent=31 // loop_exit
                _
            $region32: #{tpu_custom_call.1} parent=23 // pred_fallthru
              _
          $region24: #{tpu_custom_call.1} parent=19 // pred_fallthru
            _
          %206 = vnop
        $region20: #{tpu_custom_call.1} parent=15 // pred_fallthru
          _
        // Predicated region
        $region55: #{tpu_custom_call.1} parent=15 // pred_check
          %p207 = pneg %p80
        $region56: #{tpu_custom_call.1} parent=15 // pred_check_branch
          %209 = sbr.rel (%p207) target = $region58
        $region57: #{tpu_custom_call.1} parent=15 // pred_region
          %s210 = sand.u32 %s70, 1
          %s211 = sand.u32 %s70, 1
          %s212 = smul.addr %s211, 64
          %s213 = scalar_lea.vmem [#allocation3], %s212
          %s214 = smul.u32 8, %s18
          %s215 = smul.addr %s214, 2
          %s216 = sadd.s32 %s20, %s215
          %s217 = smul.addr %s216, 8
          %s218 = scalar_lea.vmem %s1, %s217
          // Predicated region
          $region59: #{tpu_custom_call.1} parent=57 // pred_check
            _
          $region60: #{tpu_custom_call.1} parent=57 // pred_check_branch
            %220 = sbr.rel (0) target = $region62
          $region61: #{tpu_custom_call.1} parent=57 // pred_region
            // Predicated region
            $region63: #{tpu_custom_call.1} parent=61 // pred_check
              _
            $region64: #{tpu_custom_call.1} parent=61 // pred_check_branch
              %222 = sbr.rel (0) target = $region66
            $region65: #{tpu_custom_call.1} parent=61 // pred_region
              // Predicated region
              $region78: #{tpu_custom_call.1} parent=65 // pred_check
                _
              $region79: #{tpu_custom_call.1} parent=65 // pred_check_branch
                %251 = sbr.rel (0) target = $region81
              $region80: #{tpu_custom_call.1} parent=65 // pred_region
                loop: start=0, step=1, limit=1
                $region82: #{tpu_custom_call.1} parent=80 // loop_pre_header
                  _
                $region83: #{tpu_custom_call.1} parent=80 // loop_header
                  %s253 = sphi 0, %s257
                  %p254 = scmp.ge.s32.totalorder %s253, 1
                  %s258 = sphi %s218, %s218
                  %s259 = sphi %s213, %s213
                $region84: #{tpu_custom_call.1} parent=80 // loop_header_branch
                  %256 = sbr.rel (%p254) target = $region88
                $region85: #{tpu_custom_call.1} parent=80 // loop_body
                  %v260 = vld [vmem:[%s258] sm:$0xff]
                  %261 = vst [vmem:[%s259] sm:$0xff] %v260
                  %v262 = vld [vmem:[%s258 + $0x10] sm:$0xff]
                  %263 = vst [vmem:[%s259 + $0x8] sm:$0xff] %v262
                  %v264 = vld [vmem:[%s258 + $0x20] sm:$0xff]
                  %265 = vst [vmem:[%s259 + $0x10] sm:$0xff] %v264
                  %v266 = vld [vmem:[%s258 + $0x30] sm:$0xff]
                  %267 = vst [vmem:[%s259 + $0x18] sm:$0xff] %v266
                  %v268 = vld [vmem:[%s258 + $0x40] sm:$0xff]
                  %269 = vst [vmem:[%s259 + $0x20] sm:$0xff] %v268
                  %v270 = vld [vmem:[%s258 + $0x50] sm:$0xff]
                  %271 = vst [vmem:[%s259 + $0x28] sm:$0xff] %v270
                  %v272 = vld [vmem:[%s258 + $0x60] sm:$0xff]
                  %273 = vst [vmem:[%s259 + $0x30] sm:$0xff] %v272
                  %v274 = vld [vmem:[%s258 + $0x70] sm:$0xff]
                  %275 = vst [vmem:[%s259 + $0x38] sm:$0xff] %v274
                $region86: #{tpu_custom_call.1} parent=80 // loop_footer
                  %s257 = sadd.s32 1, %s253
                $region87: #{tpu_custom_call.1} parent=80 // loop_footer_branch
                  %252 = sbr.rel target = $region83
                $region88: #{tpu_custom_call.1} parent=80 // loop_exit
                  _
              $region81: #{tpu_custom_call.1} parent=65 // pred_fallthru
                _
              // Predicated region
              $region89: #{tpu_custom_call.1} parent=65 // pred_check
                _
              $region90: #{tpu_custom_call.1} parent=65 // pred_check_branch
                %277 = sbr.rel target = $region92
              $region91: #{tpu_custom_call.1} parent=65 // pred_region
                _
              $region92: #{tpu_custom_call.1} parent=65 // pred_fallthru
                _
            $region66: #{tpu_custom_call.1} parent=61 // pred_fallthru
              _
            // Predicated region
            $region67: #{tpu_custom_call.1} parent=61 // pred_check
              _
            $region68: #{tpu_custom_call.1} parent=61 // pred_check_branch
              %224 = sbr.rel target = $region70
            $region69: #{tpu_custom_call.1} parent=61 // pred_region
              loop: start=0, step=1, limit=1
              $region71: #{tpu_custom_call.1} parent=69 // loop_pre_header
                _
              $region72: #{tpu_custom_call.1} parent=69 // loop_header
                %s227 = sphi 0, %s231
                %p228 = scmp.ge.s32.totalorder %s227, 1
                %s232 = sphi %s218, %s218
                %s233 = sphi %s213, %s213
              $region73: #{tpu_custom_call.1} parent=69 // loop_header_branch
                %230 = sbr.rel (%p228) target = $region77
              $region74: #{tpu_custom_call.1} parent=69 // loop_body
                %v234 = vld [vmem:[%s232] sm:$0xff]
                %235 = vst [vmem:[%s233] sm:$0xff] %v234
                %v236 = vld [vmem:[%s232 + $0x10] sm:$0xff]
                %237 = vst [vmem:[%s233 + $0x8] sm:$0xff] %v236
                %v238 = vld [vmem:[%s232 + $0x20] sm:$0xff]
                %239 = vst [vmem:[%s233 + $0x10] sm:$0xff] %v238
                %v240 = vld [vmem:[%s232 + $0x30] sm:$0xff]
                %241 = vst [vmem:[%s233 + $0x18] sm:$0xff] %v240
                %v242 = vld [vmem:[%s232 + $0x40] sm:$0xff]
                %243 = vst [vmem:[%s233 + $0x20] sm:$0xff] %v242
                %v244 = vld [vmem:[%s232 + $0x50] sm:$0xff]
                %245 = vst [vmem:[%s233 + $0x28] sm:$0xff] %v244
                %v246 = vld [vmem:[%s232 + $0x60] sm:$0xff]
                %247 = vst [vmem:[%s233 + $0x30] sm:$0xff] %v246
                %v248 = vld [vmem:[%s232 + $0x70] sm:$0xff]
                %249 = vst [vmem:[%s233 + $0x38] sm:$0xff] %v248
              $region75: #{tpu_custom_call.1} parent=69 // loop_footer
                %s231 = sadd.s32 1, %s227
              $region76: #{tpu_custom_call.1} parent=69 // loop_footer_branch
                %226 = sbr.rel target = $region72
              $region77: #{tpu_custom_call.1} parent=69 // loop_exit
                _
            $region70: #{tpu_custom_call.1} parent=61 // pred_fallthru
              _
          $region62: #{tpu_custom_call.1} parent=57 // pred_fallthru
            _
          %278 = vnop
        $region58: #{tpu_custom_call.1} parent=15 // pred_fallthru
          _
      $region16: #{tpu_custom_call.1} parent=5 // pred_fallthru
        _
      %p279 = scmp.le.s32.totalorder 1, %s11
      %p280 = scmp.lt.s32.totalorder %s11, 5
      %p281 = pnand %p279, %p280
      %p282 = pneg %p281
      // Predicated region
      $region93: #{tpu_custom_call.1} parent=5 // pred_check
        _
      $region94: #{tpu_custom_call.1} parent=5 // pred_check_branch
        %284 = sbr.rel (%p281) target = $region96
      $region95: #{tpu_custom_call.1} parent=5 // pred_region
        %s285 = ssub.s32 %s11, 1
        %s286 = sand.u32 %s45, 1
        %s287 = sand.u32 %s45, 1
        %s288 = smul.addr %s287, 64
        %s289 = scalar_lea.vmem [#allocation2], %s288
        // Predicated region
        $region97: #{tpu_custom_call.1} parent=95 // pred_check
          %p290 = pneg %p58
        $region98: #{tpu_custom_call.1} parent=95 // pred_check_branch
          %292 = sbr.rel (%p290) target = $region100
        $region99: #{tpu_custom_call.1} parent=95 // pred_region
          _
        $region100: #{tpu_custom_call.1} parent=95 // pred_fallthru
          _
        %s293 = sand.u32 %s73, 1
        %s294 = sand.u32 %s73, 1
        %s295 = smul.addr %s294, 64
        %s296 = scalar_lea.vmem [#allocation3], %s295
        // Predicated region
        $region101: #{tpu_custom_call.1} parent=95 // pred_check
          %p297 = pneg %p86
        $region102: #{tpu_custom_call.1} parent=95 // pred_check_branch
          %299 = sbr.rel (%p297) target = $region104
        $region103: #{tpu_custom_call.1} parent=95 // pred_region
          _
        $region104: #{tpu_custom_call.1} parent=95 // pred_fallthru
          _
        %s300 = sand.u32 %s45, 1
        %s301 = sand.u32 %s45, 1
        %s302 = smul.addr %s301, 64
        %s303 = scalar_lea.vmem [#allocation2], %s302
        %p304 = pneg %p58
        %p305 = pneg %p55
        %s306 = sand.u32 %s73, 1
        %s307 = sand.u32 %s73, 1
        %s308 = smul.addr %s307, 64
        %s309 = scalar_lea.vmem [#allocation3], %s308
        %p310 = pneg %p86
        %p311 = pneg %p83
        %p312 = pneg %p116
        %p313 = pneg %p113
        %s314 = sand.u32 %s103, 1
        %s315 = scalar_lea.sflag [#allocation5], %s314
        %s316 = sand.u32 %s103, 1
        %s317 = smul.addr %s316, 64
        %s318 = scalar_lea.vmem [#allocation4], %s317
        %s319 = smul.u32 8, %s21
        %s320 = smul.u32 8, %s21
        %s321 = smul.u32 8, %s21
        %v322 = vld [vmem:[%s289] sm:$0xff]
        %v323 = vld [vmem:[%s289 + $0x8] sm:$0xff]
        %v324 = vld [vmem:[%s289 + $0x10] sm:$0xff]
        %v325 = vld [vmem:[%s289 + $0x18] sm:$0xff]
        %v326 = vld [vmem:[%s289 + $0x20] sm:$0xff]
        %v327 = vld [vmem:[%s289 + $0x28] sm:$0xff]
        %v328 = vld [vmem:[%s289 + $0x30] sm:$0xff]
        %v329 = vld [vmem:[%s289 + $0x38] sm:$0xff]
        %v330 = vld [vmem:[%s296] sm:$0xff]
        %v331 = vld [vmem:[%s296 + $0x8] sm:$0xff]
        %v332 = vld [vmem:[%s296 + $0x10] sm:$0xff]
        %v333 = vld [vmem:[%s296 + $0x18] sm:$0xff]
        %v334 = vld [vmem:[%s296 + $0x20] sm:$0xff]
        %v335 = vld [vmem:[%s296 + $0x28] sm:$0xff]
        %v336 = vld [vmem:[%s296 + $0x30] sm:$0xff]
        %v337 = vld [vmem:[%s296 + $0x38] sm:$0xff]
        %vm338 = vcmask 64512
        %v340 = vsel %vm338, %v322, 0
        %v343 = vsel %vm338, %v330, 0
        %345 = vmatprep.subr.mxu0 0.0
        %346 = vmatpush1.xpose.msra.mxu0 %v343
        %347 = vmatprep.subr.mxu0 0.0
        %348 = vmatpush1.xpose.msra.mxu0 0.0
        %349 = vmatprep.subr.mxu0 0.0
        %350 = vmatpush1.xpose.msra.mxu0 0.0
        %351 = vmatprep.subr.mxu0 0.0
        %352 = vmatpush1.xpose.msra.mxu0 0.0
        %353 = vmatprep.subr.mxu0 0.0
        %354 = vmatpush1.xpose.msra.mxu0 0.0
        %355 = vmatprep.subr.mxu0 0.0
        %356 = vmatpush1.xpose.msra.mxu0 0.0
        %357 = vmatprep.subr.mxu0 0.0
        %358 = vmatpush1.xpose.msra.mxu0 0.0
        %359 = vmatprep.subr.mxu0 0.0
        %360 = vmatpush1.xpose.msra.mxu0 0.0
        %361 = vmatprep.subr.mxu0 0.0
        %362 = vmatpush1.xpose.msra.mxu0 0.0
        %363 = vmatprep.subr.mxu0 0.0
        %364 = vmatpush1.xpose.msra.mxu0 0.0
        %365 = vmatprep.subr.mxu0 0.0
        %366 = vmatpush1.xpose.msra.mxu0 0.0
        %367 = vmatprep.subr.mxu0 0.0
        %368 = vmatpush1.xpose.msra.mxu0 0.0
        %369 = vmatprep.subr.mxu0 0.0
        %370 = vmatpush1.xpose.msra.mxu0 0.0
        %371 = vmatprep.subr.mxu0 0.0
        %372 = vmatpush1.xpose.msra.mxu0 0.0
        %373 = vmatprep.subr.mxu0 0.0
        %374 = vmatpush1.xpose.msra.mxu0 0.0
        %375 = vmatprep.subr.mxu0 0.0
        %376 = vmatpush1.xpose.msra.mxu0 0.0
        %377 = vmatprep.subr.mxu0 0.0
        %378 = vmatpush1.xpose.msra.mxu0 0.0
        %379 = vmatprep.subr.mxu0 0.0
        %380 = vmatpush1.xpose.msra.mxu0 0.0
        %381 = vmatprep.subr.mxu0 0.0
        %382 = vmatpush1.xpose.msra.mxu0 0.0
        %383 = vmatprep.subr.mxu0 0.0
        %384 = vmatpush1.xpose.msra.mxu0 0.0
        %385 = vmatprep.subr.mxu0 0.0
        %386 = vmatpush1.xpose.msra.mxu0 0.0
        %387 = vmatprep.subr.mxu0 0.0
        %388 = vmatpush1.xpose.msra.mxu0 0.0
        %389 = vmatprep.subr.mxu0 0.0
        %390 = vmatpush1.xpose.msra.mxu0 0.0
        %391 = vmatprep.subr.mxu0 0.0
        %392 = vmatpush1.xpose.msra.mxu0 0.0
        %393 = vmatprep.subr.mxu0 0.0
        %394 = vmatpush1.xpose.msra.mxu0 0.0
        %395 = vmatprep.subr.mxu0 0.0
        %396 = vmatpush1.xpose.msra.mxu0 0.0
        %397 = vmatprep.subr.mxu0 0.0
        %398 = vmatpush1.xpose.msra.mxu0 0.0
        %399 = vmatprep.subr.mxu0 0.0
        %400 = vmatpush1.xpose.msra.mxu0 0.0
        %401 = vmatprep.subr.mxu0 0.0
        %402 = vmatpush1.xpose.msra.mxu0 0.0
        %403 = vmatprep.subr.mxu0 0.0
        %404 = vmatpush1.xpose.msra.mxu0 0.0
        %405 = vmatprep.subr.mxu0 0.0
        %406 = vmatpush1.xpose.msra.mxu0 0.0
        %407 = vmatprep.subr.mxu0 0.0
        %408 = vmatpush1.xpose.msra.mxu0 0.0
        %409 = vmatprep.mubr.f32.mxu0 0.0
        %410 = vmatmul.mubr.f32.gmra.mrb[0].mxu0 %v340
        %v411 = vpop.f32.mrb[0].mxu0
        %v412 = vadd.f32 0.0, %v411
        %v413 = vpop.f32.mrb[0].mxu0
        %414 = vdwg.mxu0
        %v416 = vsel %vm338, %v323, 0
        %v419 = vsel %vm338, %v331, 0
        %421 = vmatprep.subr.mxu0 0.0
        %422 = vmatpush1.xpose.msra.mxu0 %v419
        %423 = vmatprep.subr.mxu0 0.0
        %424 = vmatpush1.xpose.msra.mxu0 0.0
        %425 = vmatprep.subr.mxu0 0.0
        %426 = vmatpush1.xpose.msra.mxu0 0.0
        %427 = vmatprep.subr.mxu0 0.0
        %428 = vmatpush1.xpose.msra.mxu0 0.0
        %429 = vmatprep.subr.mxu0 0.0
        %430 = vmatpush1.xpose.msra.mxu0 0.0
        %431 = vmatprep.subr.mxu0 0.0
        %432 = vmatpush1.xpose.msra.mxu0 0.0
        %433 = vmatprep.subr.mxu0 0.0
        %434 = vmatpush1.xpose.msra.mxu0 0.0
        %435 = vmatprep.subr.mxu0 0.0
        %436 = vmatpush1.xpose.msra.mxu0 0.0
        %437 = vmatprep.subr.mxu0 0.0
        %438 = vmatpush1.xpose.msra.mxu0 0.0
        %439 = vmatprep.subr.mxu0 0.0
        %440 = vmatpush1.xpose.msra.mxu0 0.0
        %441 = vmatprep.subr.mxu0 0.0
        %442 = vmatpush1.xpose.msra.mxu0 0.0
        %443 = vmatprep.subr.mxu0 0.0
        %444 = vmatpush1.xpose.msra.mxu0 0.0
        %445 = vmatprep.subr.mxu0 0.0
        %446 = vmatpush1.xpose.msra.mxu0 0.0
        %447 = vmatprep.subr.mxu0 0.0
        %448 = vmatpush1.xpose.msra.mxu0 0.0
        %449 = vmatprep.subr.mxu0 0.0
        %450 = vmatpush1.xpose.msra.mxu0 0.0
        %451 = vmatprep.subr.mxu0 0.0
        %452 = vmatpush1.xpose.msra.mxu0 0.0
        %453 = vmatprep.subr.mxu0 0.0
        %454 = vmatpush1.xpose.msra.mxu0 0.0
        %455 = vmatprep.subr.mxu0 0.0
        %456 = vmatpush1.xpose.msra.mxu0 0.0
        %457 = vmatprep.subr.mxu0 0.0
        %458 = vmatpush1.xpose.msra.mxu0 0.0
        %459 = vmatprep.subr.mxu0 0.0
        %460 = vmatpush1.xpose.msra.mxu0 0.0
        %461 = vmatprep.subr.mxu0 0.0
        %462 = vmatpush1.xpose.msra.mxu0 0.0
        %463 = vmatprep.subr.mxu0 0.0
        %464 = vmatpush1.xpose.msra.mxu0 0.0
        %465 = vmatprep.subr.mxu0 0.0
        %466 = vmatpush1.xpose.msra.mxu0 0.0
        %467 = vmatprep.subr.mxu0 0.0
        %468 = vmatpush1.xpose.msra.mxu0 0.0
        %469 = vmatprep.subr.mxu0 0.0
        %470 = vmatpush1.xpose.msra.mxu0 0.0
        %471 = vmatprep.subr.mxu0 0.0
        %472 = vmatpush1.xpose.msra.mxu0 0.0
        %473 = vmatprep.subr.mxu0 0.0
        %474 = vmatpush1.xpose.msra.mxu0 0.0
        %475 = vmatprep.subr.mxu0 0.0
        %476 = vmatpush1.xpose.msra.mxu0 0.0
        %477 = vmatprep.subr.mxu0 0.0
        %478 = vmatpush1.xpose.msra.mxu0 0.0
        %479 = vmatprep.subr.mxu0 0.0
        %480 = vmatpush1.xpose.msra.mxu0 0.0
        %481 = vmatprep.subr.mxu0 0.0
        %482 = vmatpush1.xpose.msra.mxu0 0.0
        %483 = vmatprep.subr.mxu0 0.0
        %484 = vmatpush1.xpose.msra.mxu0 0.0
        %485 = vmatprep.mubr.f32.mxu0 0.0
        %486 = vmatmul.mubr.f32.gmra.mrb[0].mxu0 %v416
        %v487 = vpop.f32.mrb[0].mxu0
        %v488 = vadd.f32 0.0, %v487
        %v489 = vpop.f32.mrb[0].mxu0
        %490 = vdwg.mxu0
        %v492 = vsel %vm338, %v324, 0
        %v495 = vsel %vm338, %v332, 0
        %497 = vmatprep.subr.mxu0 0.0
        %498 = vmatpush1.xpose.msra.mxu0 %v495
        %499 = vmatprep.subr.mxu0 0.0
        %500 = vmatpush1.xpose.msra.mxu0 0.0
        %501 = vmatprep.subr.mxu0 0.0
        %502 = vmatpush1.xpose.msra.mxu0 0.0
        %503 = vmatprep.subr.mxu0 0.0
        %504 = vmatpush1.xpose.msra.mxu0 0.0
        %505 = vmatprep.subr.mxu0 0.0
        %506 = vmatpush1.xpose.msra.mxu0 0.0
        %507 = vmatprep.subr.mxu0 0.0
        %508 = vmatpush1.xpose.msra.mxu0 0.0
        %509 = vmatprep.subr.mxu0 0.0
        %510 = vmatpush1.xpose.msra.mxu0 0.0
        %511 = vmatprep.subr.mxu0 0.0
        %512 = vmatpush1.xpose.msra.mxu0 0.0
        %513 = vmatprep.subr.mxu0 0.0
        %514 = vmatpush1.xpose.msra.mxu0 0.0
        %515 = vmatprep.subr.mxu0 0.0
        %516 = vmatpush1.xpose.msra.mxu0 0.0
        %517 = vmatprep.subr.mxu0 0.0
        %518 = vmatpush1.xpose.msra.mxu0 0.0
        %519 = vmatprep.subr.mxu0 0.0
        %520 = vmatpush1.xpose.msra.mxu0 0.0
        %521 = vmatprep.subr.mxu0 0.0
        %522 = vmatpush1.xpose.msra.mxu0 0.0
        %523 = vmatprep.subr.mxu0 0.0
        %524 = vmatpush1.xpose.msra.mxu0 0.0
        %525 = vmatprep.subr.mxu0 0.0
        %526 = vmatpush1.xpose.msra.mxu0 0.0
        %527 = vmatprep.subr.mxu0 0.0
        %528 = vmatpush1.xpose.msra.mxu0 0.0
        %529 = vmatprep.subr.mxu0 0.0
        %530 = vmatpush1.xpose.msra.mxu0 0.0
        %531 = vmatprep.subr.mxu0 0.0
        %532 = vmatpush1.xpose.msra.mxu0 0.0
        %533 = vmatprep.subr.mxu0 0.0
        %534 = vmatpush1.xpose.msra.mxu0 0.0
        %535 = vmatprep.subr.mxu0 0.0
        %536 = vmatpush1.xpose.msra.mxu0 0.0
        %537 = vmatprep.subr.mxu0 0.0
        %538 = vmatpush1.xpose.msra.mxu0 0.0
        %539 = vmatprep.subr.mxu0 0.0
        %540 = vmatpush1.xpose.msra.mxu0 0.0
        %541 = vmatprep.subr.mxu0 0.0
        %542 = vmatpush1.xpose.msra.mxu0 0.0
        %543 = vmatprep.subr.mxu0 0.0
        %544 = vmatpush1.xpose.msra.mxu0 0.0
        %545 = vmatprep.subr.mxu0 0.0
        %546 = vmatpush1.xpose.msra.mxu0 0.0
        %547 = vmatprep.subr.mxu0 0.0
        %548 = vmatpush1.xpose.msra.mxu0 0.0
        %549 = vmatprep.subr.mxu0 0.0
        %550 = vmatpush1.xpose.msra.mxu0 0.0
        %551 = vmatprep.subr.mxu0 0.0
        %552 = vmatpush1.xpose.msra.mxu0 0.0
        %553 = vmatprep.subr.mxu0 0.0
        %554 = vmatpush1.xpose.msra.mxu0 0.0
        %555 = vmatprep.subr.mxu0 0.0
        %556 = vmatpush1.xpose.msra.mxu0 0.0
        %557 = vmatprep.subr.mxu0 0.0
        %558 = vmatpush1.xpose.msra.mxu0 0.0
        %559 = vmatprep.subr.mxu0 0.0
        %560 = vmatpush1.xpose.msra.mxu0 0.0
        %561 = vmatprep.mubr.f32.mxu0 0.0
        %562 = vmatmul.mubr.f32.gmra.mrb[0].mxu0 %v492
        %v563 = vpop.f32.mrb[0].mxu0
        %v564 = vadd.f32 0.0, %v563
        %v565 = vpop.f32.mrb[0].mxu0
        %566 = vdwg.mxu0
        %v568 = vsel %vm338, %v325, 0
        %v571 = vsel %vm338, %v333, 0
        %573 = vmatprep.subr.mxu0 0.0
        %574 = vmatpush1.xpose.msra.mxu0 %v571
        %575 = vmatprep.subr.mxu0 0.0
        %576 = vmatpush1.xpose.msra.mxu0 0.0
        %577 = vmatprep.subr.mxu0 0.0
        %578 = vmatpush1.xpose.msra.mxu0 0.0
        %579 = vmatprep.subr.mxu0 0.0
        %580 = vmatpush1.xpose.msra.mxu0 0.0
        %581 = vmatprep.subr.mxu0 0.0
        %582 = vmatpush1.xpose.msra.mxu0 0.0
        %583 = vmatprep.subr.mxu0 0.0
        %584 = vmatpush1.xpose.msra.mxu0 0.0
        %585 = vmatprep.subr.mxu0 0.0
        %586 = vmatpush1.xpose.msra.mxu0 0.0
        %587 = vmatprep.subr.mxu0 0.0
        %588 = vmatpush1.xpose.msra.mxu0 0.0
        %589 = vmatprep.subr.mxu0 0.0
        %590 = vmatpush1.xpose.msra.mxu0 0.0
        %591 = vmatprep.subr.mxu0 0.0
        %592 = vmatpush1.xpose.msra.mxu0 0.0
        %593 = vmatprep.subr.mxu0 0.0
        %594 = vmatpush1.xpose.msra.mxu0 0.0
        %595 = vmatprep.subr.mxu0 0.0
        %596 = vmatpush1.xpose.msra.mxu0 0.0
        %597 = vmatprep.subr.mxu0 0.0
        %598 = vmatpush1.xpose.msra.mxu0 0.0
        %599 = vmatprep.subr.mxu0 0.0
        %600 = vmatpush1.xpose.msra.mxu0 0.0
        %601 = vmatprep.subr.mxu0 0.0
        %602 = vmatpush1.xpose.msra.mxu0 0.0
        %603 = vmatprep.subr.mxu0 0.0
        %604 = vmatpush1.xpose.msra.mxu0 0.0
        %605 = vmatprep.subr.mxu0 0.0
        %606 = vmatpush1.xpose.msra.mxu0 0.0
        %607 = vmatprep.subr.mxu0 0.0
        %608 = vmatpush1.xpose.msra.mxu0 0.0
        %609 = vmatprep.subr.mxu0 0.0
        %610 = vmatpush1.xpose.msra.mxu0 0.0
        %611 = vmatprep.subr.mxu0 0.0
        %612 = vmatpush1.xpose.msra.mxu0 0.0
        %613 = vmatprep.subr.mxu0 0.0
        %614 = vmatpush1.xpose.msra.mxu0 0.0
        %615 = vmatprep.subr.mxu0 0.0
        %616 = vmatpush1.xpose.msra.mxu0 0.0
        %617 = vmatprep.subr.mxu0 0.0
        %618 = vmatpush1.xpose.msra.mxu0 0.0
        %619 = vmatprep.subr.mxu0 0.0
        %620 = vmatpush1.xpose.msra.mxu0 0.0
        %621 = vmatprep.subr.mxu0 0.0
        %622 = vmatpush1.xpose.msra.mxu0 0.0
        %623 = vmatprep.subr.mxu0 0.0
        %624 = vmatpush1.xpose.msra.mxu0 0.0
        %625 = vmatprep.subr.mxu0 0.0
        %626 = vmatpush1.xpose.msra.mxu0 0.0
        %627 = vmatprep.subr.mxu0 0.0
        %628 = vmatpush1.xpose.msra.mxu0 0.0
        %629 = vmatprep.subr.mxu0 0.0
        %630 = vmatpush1.xpose.msra.mxu0 0.0
        %631 = vmatprep.subr.mxu0 0.0
        %632 = vmatpush1.xpose.msra.mxu0 0.0
        %633 = vmatprep.subr.mxu0 0.0
        %634 = vmatpush1.xpose.msra.mxu0 0.0
        %635 = vmatprep.subr.mxu0 0.0
        %636 = vmatpush1.xpose.msra.mxu0 0.0
        %637 = vmatprep.mubr.f32.mxu0 0.0
        %638 = vmatmul.mubr.f32.gmra.mrb[0].mxu0 %v568
        %v639 = vpop.f32.mrb[0].mxu0
        %v640 = vadd.f32 0.0, %v639
        %v641 = vpop.f32.mrb[0].mxu0
        %642 = vdwg.mxu0
        %v644 = vsel %vm338, %v326, 0
        %v647 = vsel %vm338, %v334, 0
        %649 = vmatprep.subr.mxu0 0.0
        %650 = vmatpush1.xpose.msra.mxu0 %v647
        %651 = vmatprep.subr.mxu0 0.0
        %652 = vmatpush1.xpose.msra.mxu0 0.0
        %653 = vmatprep.subr.mxu0 0.0
        %654 = vmatpush1.xpose.msra.mxu0 0.0
        %655 = vmatprep.subr.mxu0 0.0
        %656 = vmatpush1.xpose.msra.mxu0 0.0
        %657 = vmatprep.subr.mxu0 0.0
        %658 = vmatpush1.xpose.msra.mxu0 0.0
        %659 = vmatprep.subr.mxu0 0.0
        %660 = vmatpush1.xpose.msra.mxu0 0.0
        %661 = vmatprep.subr.mxu0 0.0
        %662 = vmatpush1.xpose.msra.mxu0 0.0
        %663 = vmatprep.subr.mxu0 0.0
        %664 = vmatpush1.xpose.msra.mxu0 0.0
        %665 = vmatprep.subr.mxu0 0.0
        %666 = vmatpush1.xpose.msra.mxu0 0.0
        %667 = vmatprep.subr.mxu0 0.0
        %668 = vmatpush1.xpose.msra.mxu0 0.0
        %669 = vmatprep.subr.mxu0 0.0
        %670 = vmatpush1.xpose.msra.mxu0 0.0
        %671 = vmatprep.subr.mxu0 0.0
        %672 = vmatpush1.xpose.msra.mxu0 0.0
        %673 = vmatprep.subr.mxu0 0.0
        %674 = vmatpush1.xpose.msra.mxu0 0.0
        %675 = vmatprep.subr.mxu0 0.0
        %676 = vmatpush1.xpose.msra.mxu0 0.0
        %677 = vmatprep.subr.mxu0 0.0
        %678 = vmatpush1.xpose.msra.mxu0 0.0
        %679 = vmatprep.subr.mxu0 0.0
        %680 = vmatpush1.xpose.msra.mxu0 0.0
        %681 = vmatprep.subr.mxu0 0.0
        %682 = vmatpush1.xpose.msra.mxu0 0.0
        %683 = vmatprep.subr.mxu0 0.0
        %684 = vmatpush1.xpose.msra.mxu0 0.0
        %685 = vmatprep.subr.mxu0 0.0
        %686 = vmatpush1.xpose.msra.mxu0 0.0
        %687 = vmatprep.subr.mxu0 0.0
        %688 = vmatpush1.xpose.msra.mxu0 0.0
        %689 = vmatprep.subr.mxu0 0.0
        %690 = vmatpush1.xpose.msra.mxu0 0.0
        %691 = vmatprep.subr.mxu0 0.0
        %692 = vmatpush1.xpose.msra.mxu0 0.0
        %693 = vmatprep.subr.mxu0 0.0
        %694 = vmatpush1.xpose.msra.mxu0 0.0
        %695 = vmatprep.subr.mxu0 0.0
        %696 = vmatpush1.xpose.msra.mxu0 0.0
        %697 = vmatprep.subr.mxu0 0.0
        %698 = vmatpush1.xpose.msra.mxu0 0.0
        %699 = vmatprep.subr.mxu0 0.0
        %700 = vmatpush1.xpose.msra.mxu0 0.0
        %701 = vmatprep.subr.mxu0 0.0
        %702 = vmatpush1.xpose.msra.mxu0 0.0
        %703 = vmatprep.subr.mxu0 0.0
        %704 = vmatpush1.xpose.msra.mxu0 0.0
        %705 = vmatprep.subr.mxu0 0.0
        %706 = vmatpush1.xpose.msra.mxu0 0.0
        %707 = vmatprep.subr.mxu0 0.0
        %708 = vmatpush1.xpose.msra.mxu0 0.0
        %709 = vmatprep.subr.mxu0 0.0
        %710 = vmatpush1.xpose.msra.mxu0 0.0
        %711 = vmatprep.subr.mxu0 0.0
        %712 = vmatpush1.xpose.msra.mxu0 0.0
        %713 = vmatprep.mubr.f32.mxu0 0.0
        %714 = vmatmul.mubr.f32.gmra.mrb[0].mxu0 %v644
        %v715 = vpop.f32.mrb[0].mxu0
        %v716 = vadd.f32 0.0, %v715
        %v717 = vpop.f32.mrb[0].mxu0
        %718 = vdwg.mxu0
        %v720 = vsel %vm338, %v327, 0
        %v723 = vsel %vm338, %v335, 0
        %725 = vmatprep.subr.mxu0 0.0
        %726 = vmatpush1.xpose.msra.mxu0 %v723
        %727 = vmatprep.subr.mxu0 0.0
        %728 = vmatpush1.xpose.msra.mxu0 0.0
        %729 = vmatprep.subr.mxu0 0.0
        %730 = vmatpush1.xpose.msra.mxu0 0.0
        %731 = vmatprep.subr.mxu0 0.0
        %732 = vmatpush1.xpose.msra.mxu0 0.0
        %733 = vmatprep.subr.mxu0 0.0
        %734 = vmatpush1.xpose.msra.mxu0 0.0
        %735 = vmatprep.subr.mxu0 0.0
        %736 = vmatpush1.xpose.msra.mxu0 0.0
        %737 = vmatprep.subr.mxu0 0.0
        %738 = vmatpush1.xpose.msra.mxu0 0.0
        %739 = vmatprep.subr.mxu0 0.0
        %740 = vmatpush1.xpose.msra.mxu0 0.0
        %741 = vmatprep.subr.mxu0 0.0
        %742 = vmatpush1.xpose.msra.mxu0 0.0
        %743 = vmatprep.subr.mxu0 0.0
        %744 = vmatpush1.xpose.msra.mxu0 0.0
        %745 = vmatprep.subr.mxu0 0.0
        %746 = vmatpush1.xpose.msra.mxu0 0.0
        %747 = vmatprep.subr.mxu0 0.0
        %748 = vmatpush1.xpose.msra.mxu0 0.0
        %749 = vmatprep.subr.mxu0 0.0
        %750 = vmatpush1.xpose.msra.mxu0 0.0
        %751 = vmatprep.subr.mxu0 0.0
        %752 = vmatpush1.xpose.msra.mxu0 0.0
        %753 = vmatprep.subr.mxu0 0.0
        %754 = vmatpush1.xpose.msra.mxu0 0.0
        %755 = vmatprep.subr.mxu0 0.0
        %756 = vmatpush1.xpose.msra.mxu0 0.0
        %757 = vmatprep.subr.mxu0 0.0
        %758 = vmatpush1.xpose.msra.mxu0 0.0
        %759 = vmatprep.subr.mxu0 0.0
        %760 = vmatpush1.xpose.msra.mxu0 0.0
        %761 = vmatprep.subr.mxu0 0.0
        %762 = vmatpush1.xpose.msra.mxu0 0.0
        %763 = vmatprep.subr.mxu0 0.0
        %764 = vmatpush1.xpose.msra.mxu0 0.0
        %765 = vmatprep.subr.mxu0 0.0
        %766 = vmatpush1.xpose.msra.mxu0 0.0
        %767 = vmatprep.subr.mxu0 0.0
        %768 = vmatpush1.xpose.msra.mxu0 0.0
        %769 = vmatprep.subr.mxu0 0.0
        %770 = vmatpush1.xpose.msra.mxu0 0.0
        %771 = vmatprep.subr.mxu0 0.0
        %772 = vmatpush1.xpose.msra.mxu0 0.0
        %773 = vmatprep.subr.mxu0 0.0
        %774 = vmatpush1.xpose.msra.mxu0 0.0
        %775 = vmatprep.subr.mxu0 0.0
        %776 = vmatpush1.xpose.msra.mxu0 0.0
        %777 = vmatprep.subr.mxu0 0.0
        %778 = vmatpush1.xpose.msra.mxu0 0.0
        %779 = vmatprep.subr.mxu0 0.0
        %780 = vmatpush1.xpose.msra.mxu0 0.0
        %781 = vmatprep.subr.mxu0 0.0
        %782 = vmatpush1.xpose.msra.mxu0 0.0
        %783 = vmatprep.subr.mxu0 0.0
        %784 = vmatpush1.xpose.msra.mxu0 0.0
        %785 = vmatprep.subr.mxu0 0.0
        %786 = vmatpush1.xpose.msra.mxu0 0.0
        %787 = vmatprep.subr.mxu0 0.0
        %788 = vmatpush1.xpose.msra.mxu0 0.0
        %789 = vmatprep.mubr.f32.mxu0 0.0
        %790 = vmatmul.mubr.f32.gmra.mrb[0].mxu0 %v720
        %v791 = vpop.f32.mrb[0].mxu0
        %v792 = vadd.f32 0.0, %v791
        %v793 = vpop.f32.mrb[0].mxu0
        %794 = vdwg.mxu0
        %v796 = vsel %vm338, %v328, 0
        %v799 = vsel %vm338, %v336, 0
        %801 = vmatprep.subr.mxu0 0.0
        %802 = vmatpush1.xpose.msra.mxu0 %v799
        %803 = vmatprep.subr.mxu0 0.0
        %804 = vmatpush1.xpose.msra.mxu0 0.0
        %805 = vmatprep.subr.mxu0 0.0
        %806 = vmatpush1.xpose.msra.mxu0 0.0
        %807 = vmatprep.subr.mxu0 0.0
        %808 = vmatpush1.xpose.msra.mxu0 0.0
        %809 = vmatprep.subr.mxu0 0.0
        %810 = vmatpush1.xpose.msra.mxu0 0.0
        %811 = vmatprep.subr.mxu0 0.0
        %812 = vmatpush1.xpose.msra.mxu0 0.0
        %813 = vmatprep.subr.mxu0 0.0
        %814 = vmatpush1.xpose.msra.mxu0 0.0
        %815 = vmatprep.subr.mxu0 0.0
        %816 = vmatpush1.xpose.msra.mxu0 0.0
        %817 = vmatprep.subr.mxu0 0.0
        %818 = vmatpush1.xpose.msra.mxu0 0.0
        %819 = vmatprep.subr.mxu0 0.0
        %820 = vmatpush1.xpose.msra.mxu0 0.0
        %821 = vmatprep.subr.mxu0 0.0
        %822 = vmatpush1.xpose.msra.mxu0 0.0
        %823 = vmatprep.subr.mxu0 0.0
        %824 = vmatpush1.xpose.msra.mxu0 0.0
        %825 = vmatprep.subr.mxu0 0.0
        %826 = vmatpush1.xpose.msra.mxu0 0.0
        %827 = vmatprep.subr.mxu0 0.0
        %828 = vmatpush1.xpose.msra.mxu0 0.0
        %829 = vmatprep.subr.mxu0 0.0
        %830 = vmatpush1.xpose.msra.mxu0 0.0
        %831 = vmatprep.subr.mxu0 0.0
        %832 = vmatpush1.xpose.msra.mxu0 0.0
        %833 = vmatprep.subr.mxu0 0.0
        %834 = vmatpush1.xpose.msra.mxu0 0.0
        %835 = vmatprep.subr.mxu0 0.0
        %836 = vmatpush1.xpose.msra.mxu0 0.0
        %837 = vmatprep.subr.mxu0 0.0
        %838 = vmatpush1.xpose.msra.mxu0 0.0
        %839 = vmatprep.subr.mxu0 0.0
        %840 = vmatpush1.xpose.msra.mxu0 0.0
        %841 = vmatprep.subr.mxu0 0.0
        %842 = vmatpush1.xpose.msra.mxu0 0.0
        %843 = vmatprep.subr.mxu0 0.0
        %844 = vmatpush1.xpose.msra.mxu0 0.0
        %845 = vmatprep.subr.mxu0 0.0
        %846 = vmatpush1.xpose.msra.mxu0 0.0
        %847 = vmatprep.subr.mxu0 0.0
        %848 = vmatpush1.xpose.msra.mxu0 0.0
        %849 = vmatprep.subr.mxu0 0.0
        %850 = vmatpush1.xpose.msra.mxu0 0.0
        %851 = vmatprep.subr.mxu0 0.0
        %852 = vmatpush1.xpose.msra.mxu0 0.0
        %853 = vmatprep.subr.mxu0 0.0
        %854 = vmatpush1.xpose.msra.mxu0 0.0
        %855 = vmatprep.subr.mxu0 0.0
        %856 = vmatpush1.xpose.msra.mxu0 0.0
        %857 = vmatprep.subr.mxu0 0.0
        %858 = vmatpush1.xpose.msra.mxu0 0.0
        %859 = vmatprep.subr.mxu0 0.0
        %860 = vmatpush1.xpose.msra.mxu0 0.0
        %861 = vmatprep.subr.mxu0 0.0
        %862 = vmatpush1.xpose.msra.mxu0 0.0
        %863 = vmatprep.subr.mxu0 0.0
        %864 = vmatpush1.xpose.msra.mxu0 0.0
        %865 = vmatprep.mubr.f32.mxu0 0.0
        %866 = vmatmul.mubr.f32.gmra.mrb[0].mxu0 %v796
        %v867 = vpop.f32.mrb[0].mxu0
        %v868 = vadd.f32 0.0, %v867
        %v869 = vpop.f32.mrb[0].mxu0
        %870 = vdwg.mxu0
        %v872 = vsel %vm338, %v329, 0
        %v875 = vsel %vm338, %v337, 0
        %877 = vmatprep.subr.mxu0 0.0
        %878 = vmatpush1.xpose.msra.mxu0 %v875
        %879 = vmatprep.subr.mxu0 0.0
        %880 = vmatpush1.xpose.msra.mxu0 0.0
        %881 = vmatprep.subr.mxu0 0.0
        %882 = vmatpush1.xpose.msra.mxu0 0.0
        %883 = vmatprep.subr.mxu0 0.0
        %884 = vmatpush1.xpose.msra.mxu0 0.0
        %885 = vmatprep.subr.mxu0 0.0
        %886 = vmatpush1.xpose.msra.mxu0 0.0
        %887 = vmatprep.subr.mxu0 0.0
        %888 = vmatpush1.xpose.msra.mxu0 0.0
        %889 = vmatprep.subr.mxu0 0.0
        %890 = vmatpush1.xpose.msra.mxu0 0.0
        %891 = vmatprep.subr.mxu0 0.0
        %892 = vmatpush1.xpose.msra.mxu0 0.0
        %893 = vmatprep.subr.mxu0 0.0
        %894 = vmatpush1.xpose.msra.mxu0 0.0
        %895 = vmatprep.subr.mxu0 0.0
        %896 = vmatpush1.xpose.msra.mxu0 0.0
        %897 = vmatprep.subr.mxu0 0.0
        %898 = vmatpush1.xpose.msra.mxu0 0.0
        %899 = vmatprep.subr.mxu0 0.0
        %900 = vmatpush1.xpose.msra.mxu0 0.0
        %901 = vmatprep.subr.mxu0 0.0
        %902 = vmatpush1.xpose.msra.mxu0 0.0
        %903 = vmatprep.subr.mxu0 0.0
        %904 = vmatpush1.xpose.msra.mxu0 0.0
        %905 = vmatprep.subr.mxu0 0.0
        %906 = vmatpush1.xpose.msra.mxu0 0.0
        %907 = vmatprep.subr.mxu0 0.0
        %908 = vmatpush1.xpose.msra.mxu0 0.0
        %909 = vmatprep.subr.mxu0 0.0
        %910 = vmatpush1.xpose.msra.mxu0 0.0
        %911 = vmatprep.subr.mxu0 0.0
        %912 = vmatpush1.xpose.msra.mxu0 0.0
        %913 = vmatprep.subr.mxu0 0.0
        %914 = vmatpush1.xpose.msra.mxu0 0.0
        %915 = vmatprep.subr.mxu0 0.0
        %916 = vmatpush1.xpose.msra.mxu0 0.0
        %917 = vmatprep.subr.mxu0 0.0
        %918 = vmatpush1.xpose.msra.mxu0 0.0
        %919 = vmatprep.subr.mxu0 0.0
        %920 = vmatpush1.xpose.msra.mxu0 0.0
        %921 = vmatprep.subr.mxu0 0.0
        %922 = vmatpush1.xpose.msra.mxu0 0.0
        %923 = vmatprep.subr.mxu0 0.0
        %924 = vmatpush1.xpose.msra.mxu0 0.0
        %925 = vmatprep.subr.mxu0 0.0
        %926 = vmatpush1.xpose.msra.mxu0 0.0
        %927 = vmatprep.subr.mxu0 0.0
        %928 = vmatpush1.xpose.msra.mxu0 0.0
        %929 = vmatprep.subr.mxu0 0.0
        %930 = vmatpush1.xpose.msra.mxu0 0.0
        %931 = vmatprep.subr.mxu0 0.0
        %932 = vmatpush1.xpose.msra.mxu0 0.0
        %933 = vmatprep.subr.mxu0 0.0
        %934 = vmatpush1.xpose.msra.mxu0 0.0
        %935 = vmatprep.subr.mxu0 0.0
        %936 = vmatpush1.xpose.msra.mxu0 0.0
        %937 = vmatprep.subr.mxu0 0.0
        %938 = vmatpush1.xpose.msra.mxu0 0.0
        %939 = vmatprep.subr.mxu0 0.0
        %940 = vmatpush1.xpose.msra.mxu0 0.0
        %941 = vmatprep.mubr.f32.mxu0 0.0
        %942 = vmatmul.mubr.f32.gmra.mrb[0].mxu0 %v872
        %v943 = vpop.f32.mrb[0].mxu0
        %v944 = vadd.f32 0.0, %v943
        %v945 = vpop.f32.mrb[0].mxu0
        %946 = vdwg.mxu0
        %v947 = vmul.f32 %v412, 0.35355338
        %v948 = vmul.f32 %v488, 0.35355338
        %v949 = vmul.f32 %v564, 0.35355338
        %v950 = vmul.f32 %v640, 0.35355338
        %v951 = vmul.f32 %v716, 0.35355338
        %v952 = vmul.f32 %v792, 0.35355338
        %v953 = vmul.f32 %v868, 0.35355338
        %v954 = vmul.f32 %v944, 0.35355338
        %955 = vst.msk [vmem:[%s318] sm:$0xff] %vm338, %v947
        %956 = vst.msk [vmem:[%s318 + $0x8] sm:$0xff] %vm338, %v948
        %957 = vst.msk [vmem:[%s318 + $0x10] sm:$0xff] %vm338, %v949
        %958 = vst.msk [vmem:[%s318 + $0x18] sm:$0xff] %vm338, %v950
        %959 = vst.msk [vmem:[%s318 + $0x20] sm:$0xff] %vm338, %v951
        %960 = vst.msk [vmem:[%s318 + $0x28] sm:$0xff] %vm338, %v952
        %961 = vst.msk [vmem:[%s318 + $0x30] sm:$0xff] %vm338, %v953
        %962 = vst.msk [vmem:[%s318 + $0x38] sm:$0xff] %vm338, %v954
        %s963 = sand.u32 %s103, 1
        %s964 = scalar_lea.sflag [#allocation5], %s963
        %s965 = sand.u32 %s103, 1
        %s966 = smul.addr %s965, 64
        %s967 = scalar_lea.vmem [#allocation4], %s966
        // Predicated region
        $region105: #{tpu_custom_call.1} parent=95 // pred_check
          %p968 = pneg %p113
        $region106: #{tpu_custom_call.1} parent=95 // pred_check_branch
          %970 = sbr.rel (%p968) target = $region108
        $region107: #{tpu_custom_call.1} parent=95 // pred_region
          %s971 = smul.u32 8, %s21
          %s973 = ssub.s32 1024, 1024
          %974 = vsyncadd %s964, %s973
          %s975 = smul.addr %s22, 2
          %s976 = sadd.s32 %s23, %s975
          %s977 = smul.addr %s971, 4
          %s978 = sadd.s32 %s976, %s977
          %s979 = smul.addr %s978, 128
          %s980 = scalar_lea.hbm %s2, %s979
          %s981 = sshll.u32 %s967, 4
          %s982 = int_to_ptr.vmem [resolvable:$true] %s981
          %987 = dma.vmem_to_hbm [thread:$0]  %s982, 1024, %s980, %s964, 128, 512, 8
        $region108: #{tpu_custom_call.1} parent=95 // pred_fallthru
          _
      $region96: #{tpu_custom_call.1} parent=5 // pred_fallthru
        _
      %p988 = scmp.le.s32.totalorder 2, %s11
      // Predicated region
      $region109: #{tpu_custom_call.1} parent=5 // pred_check
        %p989 = pneg %p988
      $region110: #{tpu_custom_call.1} parent=5 // pred_check_branch
        %991 = sbr.rel (%p989) target = $region112
      $region111: #{tpu_custom_call.1} parent=5 // pred_region
        %s992 = ssub.s32 %s11, 2
        // Predicated region
        $region113: #{tpu_custom_call.1} parent=111 // pred_check
          %p993 = pneg %p119
        $region114: #{tpu_custom_call.1} parent=111 // pred_check_branch
          %995 = sbr.rel (%p993) target = $region116
        $region115: #{tpu_custom_call.1} parent=111 // pred_region
          %s996 = sand.u32 %s104, 1
          %s997 = scalar_lea.sflag [#allocation5], %s996
          %s998 = sand.u32 %s104, 1
          %s999 = smul.addr %s998, 64
          %s1000 = scalar_lea.vmem [#allocation4], %s999
          %1001 = dma.done %s997, 1024
        $region116: #{tpu_custom_call.1} parent=111 // pred_fallthru
          _
      $region112: #{tpu_custom_call.1} parent=5 // pred_fallthru
        _
    $region6: #{tpu_custom_call.1} parent=1 // loop_footer
      %s15 = sadd.s32 1, %s11
    $region7: #{tpu_custom_call.1} parent=1 // loop_footer_branch
      %10 = sbr.rel target = $region3
    $region8: #{tpu_custom_call.1} parent=1 // loop_exit
      _
    %1002 = vsyncpa [#allocation5], 1
    %s1003 = scalar_lea.sflag [#allocation5], 1
    %1004 = vsyncpa %s1003, 1

</llo_original>
